<compile_context>
chip_gen: v7x
topology: tpu7x:2x2x1
jax: 0.10.0
libtpu: 0.0.40
codegen_flags: <defaults>
</compile_context>

<pallas_src>
import jax
import jax.numpy as jnp
from jax.experimental import pallas as pl
from jax.experimental.pallas import tpu as pltpu


def att_kernel(bias_ref, gru_ref, w_ref, u_ref, o_ref):
    g = gru_ref[...]                       # (TB, S, D), input dtype (f32 or bf16)
    TB, S, D = g.shape
    A = w_ref.shape[1]

    # One fused MXU matmul for all TB*S rows of this block (f32 accumulate),
    # then a second tiny matmul with u to keep the A-reduction on the MXU.
    g2 = g.reshape(TB * S, D)                                   # pure view (S % 8 == 0)
    attn_tanh = jnp.tanh(
        jnp.dot(g2, w_ref[...], preferred_element_type=jnp.float32))   # (TB*S, A) f32
    scores = jnp.dot(attn_tanh, u_ref[...].astype(jnp.float32),
                     preferred_element_type=jnp.float32)        # (TB*S, 1) f32

    # Lane-major (TB, S) scores; masking is a precomputed additive bias (0 / -1e9).
    scores = scores.reshape(TB, S) + bias_ref[...]              # (TB, S) f32

    # Softmax over the sequence (lane) axis, kept unnormalized; normalize once at
    # the end on the (TB, D) pooled result instead of on (TB, S) alphas.
    m = jnp.max(scores, axis=-1, keepdims=True)                 # (TB, 1)
    e = jnp.exp(scores - m)                                     # (TB, S) f32
    denom = jnp.sum(e, axis=-1, keepdims=True)                  # (TB, 1)

    # Pooled output without an f32 copy of g: VPU multiply + sublane reduce over S.
    w_s = e.astype(g.dtype)                                     # (TB, S)
    pooled = jnp.sum(w_s[:, :, None] * g, axis=1)               # (TB, D), g.dtype

    # approx=True is a further EUP win in prod; kept exact here for the f32 check.
    inv = pl.reciprocal(denom, approx=False)                    # (TB, 1) f32
    o_ref[...] = (pooled.astype(jnp.float32) * inv).astype(o_ref.dtype)


def att_forward(x, gru_output, w_omega, u_omega, *, rows_per_block=None):
    B, S, F = x.shape
    _, _, D = gru_output.shape
    A = w_omega.shape[1]
    out_dtype = gru_output.dtype

    # Padding mask -> additive bias, precomputed outside the kernel (x never enters it).
    mask = jnp.sign(jnp.abs(jnp.sum(x.astype(jnp.float32), axis=-1)))   # (B, S) 0/1
    bias = (mask - 1.0) * jnp.float32(1e9)                              # 0 keep / -1e9 pad

    # Pad S to a sublane multiple so the in-kernel reshape stays a pure view.
    S_p = pl.cdiv(S, 8) * 8
    if S_p != S:
        bias = jnp.pad(bias, ((0, 0), (0, S_p - S)),
                       constant_values=jnp.float32(-1e9))
        gru_output = jnp.pad(gru_output, ((0, 0), (0, S_p - S), (0, 0)))

    # TODO(synk): for production D not already a multiple of 128, pad D of gru/w to
    # 128 lanes for unmasked output stores; skipped here since at demo D=32 it would
    # quadruple the HBM read of gru_output on an HBM-bound kernel.

    itemsize = jnp.dtype(gru_output.dtype).itemsize
    # Per-batch-row VMEM bytes of one grid step: double-buffered streams plus
    # in-kernel temporaries (attn_tanh, scores/e, weighted product, accumulator).
    row_bytes = (
        2 * S_p * D * itemsize      # gru double-buffer
        + 2 * S_p * 4               # bias double-buffer
        + 2 * D * 4                 # output double-buffer
        + S_p * A * 4               # attn_tanh (f32)
        + 4 * S_p * 4               # scores / e / weight temps (f32)
        + S_p * D * itemsize        # weighted product before the S-reduce
        + D * 4                     # pooled accumulator
    )
    fixed_bytes = 2 * (D * A + A) * itemsize + (1 << 20)   # resident weights + slack

    if rows_per_block is None:
        budget = 36 * 1024 * 1024          # target footprint; fits every generation
        cap = max(1, (budget - fixed_bytes) // row_bytes)
        if B <= cap:
            rows_per_block = B
        else:
            rows_per_block = max(8, (min(cap, B) // 8) * 8)
        # Keep >= 2 grid steps for large batches so v7x can shard the parallel
        # axis across both TensorCores.
        if B >= 16 and rows_per_block >= B:
            rows_per_block = min(rows_per_block,
                                 max(8, ((B + 1) // 2 + 7) // 8 * 8))
    TB = rows_per_block

    # Explicit scoped-VMEM limit sized from the real footprint (defaults would be
    # 16 MiB on v5e / 32 MiB on v6e+); stay well under v7x's 64 MiB physical per-TC.
    footprint = fixed_bytes + TB * row_bytes
    vmem_limit_bytes = int(min(56 * 1024 * 1024,
                               max(footprint + (8 << 20), 40 << 20)))

    # Pad the batch so it divides evenly into TB-row blocks (padded rows are inert:
    # zero gru rows + fully-masked bias -> zero pooled output, sliced off below).
    Bp = pl.cdiv(B, TB) * TB
    if Bp != B:
        pad = Bp - B
        bias = jnp.pad(bias, ((0, pad), (0, 0)),
                       constant_values=jnp.float32(-1e9))
        gru_output = jnp.pad(gru_output, ((0, pad), (0, 0), (0, 0)))

    u2 = u_omega.reshape(A, 1)

    out = pl.pallas_call(
        att_kernel,
        out_shape=jax.ShapeDtypeStruct((Bp, D), out_dtype),
        grid_spec=pltpu.PrefetchScalarGridSpec(
            num_scalar_prefetch=0,
            grid=(Bp // TB,),
            in_specs=[
                pl.BlockSpec((TB, S_p), lambda b: (b, 0)),        # additive bias
                pl.BlockSpec((TB, S_p, D), lambda b: (b, 0, 0)),  # gru_output
                pl.BlockSpec((D, A), lambda b: (0, 0)),           # w_omega (resident)
                pl.BlockSpec((A, 1), lambda b: (0, 0)),           # u_omega (resident)
            ],
            out_specs=pl.BlockSpec((TB, D), lambda b: (b, 0)),
        ),
        compiler_params=pltpu.CompilerParams(
            dimension_semantics=("parallel",),
            vmem_limit_bytes=vmem_limit_bytes),
    )(bias, gru_output, w_omega, u2)
    return out[:B]   # (B, D)


def att_reference(x, gru_output, w_omega, u_omega):
    mask = jnp.sign(jnp.abs(jnp.sum(x, axis=-1)))
    attn_tanh = jnp.tanh(gru_output @ w_omega)
    attn_hidden = attn_tanh @ u_omega
    attn_hidden = jnp.where(mask == 0, jnp.float32(-1e9), attn_hidden)
    alphas = jax.nn.softmax(attn_hidden, axis=1)
    return jnp.sum(gru_output * alphas[..., None], axis=1)


if __name__ == "__main__":
    # Module hyperparameters (small, consistent with the forward's shape contract)
    hidden_size = 32
    num_layers = 1
    attention_size = 16
    B, S, F = 2, 8, 16
    D = hidden_size * num_layers

    key = jax.random.PRNGKey(0)
    kx, kg = jax.random.split(key)
    x = jax.random.normal(kx, (B, S, F), dtype=jnp.float32)
    # zero out one sequence position so the mask / padding path is exercised
    x = x.at[0, 3, :].set(0.0)
    gru_output = jax.random.normal(kg, (B, S, D), dtype=jnp.float32)

    # nn.init.constant_(..., 0.001) for both parameters
    w_omega = jnp.full((D, attention_size), 0.001, dtype=jnp.float32)
    u_omega = jnp.full((attention_size,), 0.001, dtype=jnp.float32)

    out = att_forward(x, gru_output, w_omega, u_omega)
    out = jax.block_until_ready(out)

    ref = att_reference(x, gru_output, w_omega, u_omega)
    assert out.shape == (B, D), out.shape
    assert jnp.allclose(out, ref, atol=1e-5, rtol=1e-5), (out, ref)
    print("KERNEL_OK")
</pallas_src>

<mosaic_0001>
module attributes {stable_mosaic.version = 11 : i64} {
  func.func @att_kernel(%arg0: i32, %arg1: memref<2x8xf32, #tpu.memory_space<vmem>>, %arg2: memref<2x8x32xf32, #tpu.memory_space<vmem>>, %arg3: memref<32x16xf32, #tpu.memory_space<vmem>>, %arg4: memref<16x1xf32, #tpu.memory_space<vmem>>, %arg5: memref<2x32xf32, #tpu.memory_space<vmem>>) attributes {dimension_semantics = [#tpu.dimension_semantics<parallel>], iteration_bounds = array<i64: 1>, scalar_prefetch = 0 : i64, scratch_operands = 0 : i64, tpu.core_type = #tpu.core_type<tc>, window_params = [{transform_indices = @transform_0, window_bounds = array<i64: 2, 8>}, {transform_indices = @transform_1, window_bounds = array<i64: 2, 8, 32>}, {pipeline_mode = #tpu.pipeline_mode<synchronous>, transform_indices = @transform_2, window_bounds = array<i64: 32, 16>}, {pipeline_mode = #tpu.pipeline_mode<synchronous>, transform_indices = @transform_3, window_bounds = array<i64: 16, 1>}, {transform_indices = @transform_4, window_bounds = array<i64: 2, 32>}]} {
    %c0 = arith.constant 0 : index
    %c0_0 = arith.constant 0 : index
    %c0_1 = arith.constant 0 : index
    %0 = vector.load %arg2[%c0, %c0_0, %c0_1] : memref<2x8x32xf32, #tpu.memory_space<vmem>>, vector<2x8x32xf32>
    %1 = vector.shape_cast %0 : vector<2x8x32xf32> to vector<16x32xf32>
    %c0_2 = arith.constant 0 : index
    %c0_3 = arith.constant 0 : index
    %2 = vector.load %arg3[%c0_2, %c0_3] : memref<32x16xf32, #tpu.memory_space<vmem>>, vector<32x16xf32>
    %cst = arith.constant dense<0.000000e+00> : vector<16x16xf32>
    %3 = tpu.matmul %1, %2, %cst {dimension_numbers = #tpu.dot_dimension_numbers<[1], [0], [0], [1], [0, 0, 1, 1], [], []>} : vector<16x32xf32>, vector<32x16xf32>, vector<16x16xf32> -> vector<16x16xf32>
    %4 = math.tanh %3 : vector<16x16xf32>
    %c0_4 = arith.constant 0 : index
    %c0_5 = arith.constant 0 : index
    %5 = vector.load %arg4[%c0_4, %c0_5] : memref<16x1xf32, #tpu.memory_space<vmem>>, vector<16x1xf32>
    %cst_6 = arith.constant dense<0.000000e+00> : vector<16x1xf32>
    %6 = tpu.matmul %4, %5, %cst_6 {dimension_numbers = #tpu.dot_dimension_numbers<[1], [0], [0], [1], [0, 0, 1, 1], [], []>} : vector<16x16xf32>, vector<16x1xf32>, vector<16x1xf32> -> vector<16x1xf32>
    %7 = vector.shape_cast %6 : vector<16x1xf32> to vector<2x8xf32>
    %c0_7 = arith.constant 0 : index
    %c0_8 = arith.constant 0 : index
    %8 = vector.load %arg1[%c0_7, %c0_8] : memref<2x8xf32, #tpu.memory_space<vmem>>, vector<2x8xf32>
    %9 = arith.addf %7, %8 : vector<2x8xf32>
    %cst_9 = arith.constant dense<0xFF800000> : vector<2xf32>
    %10 = vector.multi_reduction <maximumf>, %9, %cst_9 [1] : vector<2x8xf32> to vector<2xf32>
    %11 = vector.shape_cast %10 : vector<2xf32> to vector<2x1xf32>
    %12 = vector.broadcast %11 : vector<2x1xf32> to vector<2x8xf32>
    %13 = arith.subf %9, %12 : vector<2x8xf32>
    %14 = math.exp %13 : vector<2x8xf32>
    %cst_10 = arith.constant dense<0.000000e+00> : vector<2xf32>
    %15 = vector.multi_reduction <add>, %14, %cst_10 [1] : vector<2x8xf32> to vector<2xf32>
    %16 = vector.shape_cast %15 : vector<2xf32> to vector<2x1xf32>
    %17 = vector.shape_cast %14 : vector<2x8xf32> to vector<2x8x1xf32>
    %18 = vector.broadcast %17 : vector<2x8x1xf32> to vector<2x8x32xf32>
    %19 = arith.mulf %18, %0 : vector<2x8x32xf32>
    %cst_11 = arith.constant dense<0.000000e+00> : vector<2x32xf32>
    %20 = vector.multi_reduction <add>, %19, %cst_11 [1] : vector<2x8x32xf32> to vector<2x32xf32>
    %21 = tpu.reciprocal %16 : vector<2x1xf32> -> vector<2x1xf32>
    %22 = vector.broadcast %21 : vector<2x1xf32> to vector<2x32xf32>
    %23 = arith.mulf %20, %22 : vector<2x32xf32>
    %c0_12 = arith.constant 0 : index
    %c0_13 = arith.constant 0 : index
    %24 = vector.load %arg5[%c0_12, %c0_13] : memref<2x32xf32, #tpu.memory_space<vmem>>, vector<2x32xf32>
    tpu.vector_store %arg5[%c0_12, %c0_13], %23 {strides = array<i32>} : memref<2x32xf32, #tpu.memory_space<vmem>>, vector<2x32xf32>,
    return
  }
  func.func @transform_0(%arg0: i32) -> (i32, i32) {
    %c0_i32 = arith.constant 0 : i32
    %c0_i32_0 = arith.constant 0 : i32
    return %arg0, %c0_i32 : i32, i32
  }
  func.func @transform_1(%arg0: i32) -> (i32, i32, i32) {
    %c0_i32 = arith.constant 0 : i32
    %c0_i32_0 = arith.constant 0 : i32
    %c0_i32_1 = arith.constant 0 : i32
    return %arg0, %c0_i32, %c0_i32_0 : i32, i32, i32
  }
  func.func @transform_2(%arg0: i32) -> (i32, i32) {
    %c0_i32 = arith.constant 0 : i32
    %c0_i32_0 = arith.constant 0 : i32
    %c0_i32_1 = arith.constant 0 : i32
    return %c0_i32, %c0_i32_0 : i32, i32
  }
  func.func @transform_3(%arg0: i32) -> (i32, i32) {
    %c0_i32 = arith.constant 0 : i32
    %c0_i32_0 = arith.constant 0 : i32
    %c0_i32_1 = arith.constant 0 : i32
    return %c0_i32, %c0_i32_0 : i32, i32
  }
  func.func @transform_4(%arg0: i32) -> (i32, i32) {
    %c0_i32 = arith.constant 0 : i32
    %c0_i32_0 = arith.constant 0 : i32
    return %arg0, %c0_i32 : i32, i32
  }
}

</mosaic_0001>

<llo_original>
// kernel: tpu_custom_call.1
$region0: #{tpu_custom_call.1}
  #allocation0 [shape = 'u32[]', space=smem, size = 0x4, offset = 0x4, fixed_abs, tag = 'smem constant byte address 0x4 - core index']
  #allocation1 [shape = 'u32[144,128]{1,0:T(1,128)}', space=vmem, size = 0x12000, scoped, tag = 'internal scratch']
  %s0 = inlined_call_operand.vmem [shape: f32[2,8], index: 0, kind: input, shape index: {}]
  %s1 = inlined_call_operand.vmem [shape: f32[2,8,32], index: 1, kind: input, shape index: {}]
  %s2 = inlined_call_operand.vmem [shape: f32[32,16], index: 2, kind: input, shape index: {}]
  %s3 = inlined_call_operand.vmem [shape: f32[16,1], index: 3, kind: input, shape index: {}]
  %s4 = inlined_call_operand.hbm [shape: f32[2,32], index: 4, kind: output, shape index: {}]
  %s5 = sld [smem:[#allocation0]]
  $region26: #{tpu_custom_call.1} parent=0
    _
  %s7 = ssub.s32 1, %s5
  %s8 = scalar_select 0, %s7, %s5
  $region1: #{tpu_custom_call.1} parent=0
    #allocation2 [shape = 'u8[1024]{0}', space=vmem, size = 0x400, scoped, tag = 'output window, operand 0, single buffered']
    #allocation3 [shape = 's32[1]{0}', space=sflag, size = 0x4, scoped, tag = 'scoped memory for tpu_custom_call.1']
    %9 = vsyncpa [#allocation3], 0
    // Predicated region
    $region2: #{tpu_custom_call.1} parent=1 // pred_check
      _
    $region3: #{tpu_custom_call.1} parent=1 // pred_check_branch
      %11 = sbr.rel (0) target = $region5
    $region4: #{tpu_custom_call.1} parent=1 // pred_region
      _
    $region5: #{tpu_custom_call.1} parent=1 // pred_fallthru
      _
    // Predicated region
    $region6: #{tpu_custom_call.1} parent=1 // pred_check
      _
    $region7: #{tpu_custom_call.1} parent=1 // pred_check_branch
      %13 = sbr.rel (0) target = $region9
    $region8: #{tpu_custom_call.1} parent=1 // pred_region
      _
    $region9: #{tpu_custom_call.1} parent=1 // pred_fallthru
      _
    // Predicated region
    $region10: #{tpu_custom_call.1} parent=1 // pred_check
      _
    $region11: #{tpu_custom_call.1} parent=1 // pred_check_branch
      %15 = sbr.rel (0) target = $region13
    $region12: #{tpu_custom_call.1} parent=1 // pred_region
      _
    $region13: #{tpu_custom_call.1} parent=1 // pred_fallthru
      _
    // Predicated region
    $region14: #{tpu_custom_call.1} parent=1 // pred_check
      _
    $region15: #{tpu_custom_call.1} parent=1 // pred_check_branch
      %17 = sbr.rel (0) target = $region17
    $region16: #{tpu_custom_call.1} parent=1 // pred_region
      _
    $region17: #{tpu_custom_call.1} parent=1 // pred_fallthru
      _
    %v18 = vld [vmem:[%s1] sm:$0xff]
    %v19 = vld [vmem:[%s1 + $0x8] sm:$0xff]
    %v20 = vld [vmem:[%s2] sm:$0xff]
    %v21 = vld [vmem:[%s2 + $0x8] sm:$0xff]
    %v22 = vld [vmem:[%s2 + $0x10] sm:$0xff]
    %v23 = vld [vmem:[%s2 + $0x18] sm:$0xff]
    %vm24 = vcmask 261120
    %v26 = vsel %vm24, %v18, 0
    %v29 = vsel %vm24, %v19, 0
    %31 = vmatprep.subr.mxu0 0.0
    %32 = vmatpush1.msra.mxu0 %v20
    %33 = vmatprep.subr.mxu0 0.0
    %34 = vmatpush1.msra.mxu0 %v21
    %35 = vmatprep.subr.mxu0 0.0
    %36 = vmatpush1.msra.mxu0 %v22
    %37 = vmatprep.subr.mxu0 0.0
    %38 = vmatpush1.msra.mxu0 %v23
    %39 = vmatprep.subr.mxu0 0.0
    %40 = vmatpush1.msra.mxu0 0.0
    %41 = vmatprep.subr.mxu0 0.0
    %42 = vmatpush1.msra.mxu0 0.0
    %43 = vmatprep.subr.mxu0 0.0
    %44 = vmatpush1.msra.mxu0 0.0
    %45 = vmatprep.subr.mxu0 0.0
    %46 = vmatpush1.msra.mxu0 0.0
    %47 = vmatprep.subr.mxu0 0.0
    %48 = vmatpush1.msra.mxu0 0.0
    %49 = vmatprep.subr.mxu0 0.0
    %50 = vmatpush1.msra.mxu0 0.0
    %51 = vmatprep.subr.mxu0 0.0
    %52 = vmatpush1.msra.mxu0 0.0
    %53 = vmatprep.subr.mxu0 0.0
    %54 = vmatpush1.msra.mxu0 0.0
    %55 = vmatprep.subr.mxu0 0.0
    %56 = vmatpush1.msra.mxu0 0.0
    %57 = vmatprep.subr.mxu0 0.0
    %58 = vmatpush1.msra.mxu0 0.0
    %59 = vmatprep.subr.mxu0 0.0
    %60 = vmatpush1.msra.mxu0 0.0
    %61 = vmatprep.subr.mxu0 0.0
    %62 = vmatpush1.msra.mxu0 0.0
    %63 = vmatprep.subr.mxu0 0.0
    %64 = vmatpush1.msra.mxu0 0.0
    %65 = vmatprep.subr.mxu0 0.0
    %66 = vmatpush1.msra.mxu0 0.0
    %67 = vmatprep.subr.mxu0 0.0
    %68 = vmatpush1.msra.mxu0 0.0
    %69 = vmatprep.subr.mxu0 0.0
    %70 = vmatpush1.msra.mxu0 0.0
    %71 = vmatprep.subr.mxu0 0.0
    %72 = vmatpush1.msra.mxu0 0.0
    %73 = vmatprep.subr.mxu0 0.0
    %74 = vmatpush1.msra.mxu0 0.0
    %75 = vmatprep.subr.mxu0 0.0
    %76 = vmatpush1.msra.mxu0 0.0
    %77 = vmatprep.subr.mxu0 0.0
    %78 = vmatpush1.msra.mxu0 0.0
    %79 = vmatprep.subr.mxu0 0.0
    %80 = vmatpush1.msra.mxu0 0.0
    %81 = vmatprep.subr.mxu0 0.0
    %82 = vmatpush1.msra.mxu0 0.0
    %83 = vmatprep.subr.mxu0 0.0
    %84 = vmatpush1.msra.mxu0 0.0
    %85 = vmatprep.subr.mxu0 0.0
    %86 = vmatpush1.msra.mxu0 0.0
    %87 = vmatprep.subr.mxu0 0.0
    %88 = vmatpush1.msra.mxu0 0.0
    %89 = vmatprep.subr.mxu0 0.0
    %90 = vmatpush1.msra.mxu0 0.0
    %91 = vmatprep.subr.mxu0 0.0
    %92 = vmatpush1.msra.mxu0 0.0
    %93 = vmatprep.subr.mxu0 0.0
    %94 = vmatpush1.msra.mxu0 0.0
    %95 = vmatprep.mubr.f32.mxu0 0.0
    %96 = vmatmul.mubr.f32.gmra.mrb[0].mxu0 %v26
    %v97 = vpop.f32.mrb[0].mxu0
    %v98 = vadd.f32 0.0, %v97
    %v99 = vpop.f32.mrb[0].mxu0
    %100 = vmatprep.mubr.f32.mxu0 0.0
    %101 = vmatmul.mubr.f32.gmra.mrb[0].mxu0 %v29
    %v102 = vpop.f32.mrb[0].mxu0
    %v103 = vadd.f32 0.0, %v102
    %v104 = vpop.f32.mrb[0].mxu0
    %105 = vdwg.mxu0
    %v106 = vtanh.pop %v98
    %v107 = vtanh.pop %v103
    %v108 = vld [vmem:[%s3] sm:$0xff]
    %v109 = vld [vmem:[%s3 + $0x8] sm:$0xff]
    %vm110 = vcmask 130048
    %v112 = vsel %vm110, %v106, 0
    %v115 = vsel %vm110, %v107, 0
    %117 = vmatprep.subr.mxu0 0.0
    %118 = vmatpush1.msra.mxu0 %v108
    %119 = vmatprep.subr.mxu0 0.0
    %120 = vmatpush1.msra.mxu0 %v109
    %121 = vmatprep.subr.mxu0 0.0
    %122 = vmatpush1.msra.mxu0 0.0
    %123 = vmatprep.subr.mxu0 0.0
    %124 = vmatpush1.msra.mxu0 0.0
    %125 = vmatprep.subr.mxu0 0.0
    %126 = vmatpush1.msra.mxu0 0.0
    %127 = vmatprep.subr.mxu0 0.0
    %128 = vmatpush1.msra.mxu0 0.0
    %129 = vmatprep.subr.mxu0 0.0
    %130 = vmatpush1.msra.mxu0 0.0
    %131 = vmatprep.subr.mxu0 0.0
    %132 = vmatpush1.msra.mxu0 0.0
    %133 = vmatprep.subr.mxu0 0.0
    %134 = vmatpush1.msra.mxu0 0.0
    %135 = vmatprep.subr.mxu0 0.0
    %136 = vmatpush1.msra.mxu0 0.0
    %137 = vmatprep.subr.mxu0 0.0
    %138 = vmatpush1.msra.mxu0 0.0
    %139 = vmatprep.subr.mxu0 0.0
    %140 = vmatpush1.msra.mxu0 0.0
    %141 = vmatprep.subr.mxu0 0.0
    %142 = vmatpush1.msra.mxu0 0.0
    %143 = vmatprep.subr.mxu0 0.0
    %144 = vmatpush1.msra.mxu0 0.0
    %145 = vmatprep.subr.mxu0 0.0
    %146 = vmatpush1.msra.mxu0 0.0
    %147 = vmatprep.subr.mxu0 0.0
    %148 = vmatpush1.msra.mxu0 0.0
    %149 = vmatprep.subr.mxu0 0.0
    %150 = vmatpush1.msra.mxu0 0.0
    %151 = vmatprep.subr.mxu0 0.0
    %152 = vmatpush1.msra.mxu0 0.0
    %153 = vmatprep.subr.mxu0 0.0
    %154 = vmatpush1.msra.mxu0 0.0
    %155 = vmatprep.subr.mxu0 0.0
    %156 = vmatpush1.msra.mxu0 0.0
    %157 = vmatprep.subr.mxu0 0.0
    %158 = vmatpush1.msra.mxu0 0.0
    %159 = vmatprep.subr.mxu0 0.0
    %160 = vmatpush1.msra.mxu0 0.0
    %161 = vmatprep.subr.mxu0 0.0
    %162 = vmatpush1.msra.mxu0 0.0
    %163 = vmatprep.subr.mxu0 0.0
    %164 = vmatpush1.msra.mxu0 0.0
    %165 = vmatprep.subr.mxu0 0.0
    %166 = vmatpush1.msra.mxu0 0.0
    %167 = vmatprep.subr.mxu0 0.0
    %168 = vmatpush1.msra.mxu0 0.0
    %169 = vmatprep.subr.mxu0 0.0
    %170 = vmatpush1.msra.mxu0 0.0
    %171 = vmatprep.subr.mxu0 0.0
    %172 = vmatpush1.msra.mxu0 0.0
    %173 = vmatprep.subr.mxu0 0.0
    %174 = vmatpush1.msra.mxu0 0.0
    %175 = vmatprep.subr.mxu0 0.0
    %176 = vmatpush1.msra.mxu0 0.0
    %177 = vmatprep.subr.mxu0 0.0
    %178 = vmatpush1.msra.mxu0 0.0
    %179 = vmatprep.subr.mxu0 0.0
    %180 = vmatpush1.msra.mxu0 0.0
    %181 = vmatprep.mubr.f32.mxu0 0.0
    %182 = vmatmul.mubr.f32.gmra.mrb[0].mxu0 %v112
    %v183 = vpop.f32.mrb[0].mxu0
    %v184 = vadd.f32 0.0, %v183
    %v185 = vpop.f32.mrb[0].mxu0
    %186 = vmatprep.mubr.f32.mxu0 0.0
    %187 = vmatmul.mubr.f32.gmra.mrb[0].mxu0 %v115
    %v188 = vpop.f32.mrb[0].mxu0
    %v189 = vadd.f32 0.0, %v188
    %v190 = vpop.f32.mrb[0].mxu0
    %191 = vdwg.mxu0
    %v192 = vld [vmem:[%s0] sm:$0x3]
    %v194 = vlaneseq
    %v195 = vshrl.u32 %v194, 7
    %v196 = vsub.s32 0, %v195
    %v197 = vrot.slane %v192, %v196
    %199 = vbcast.lane.b32.xlu0 %v197, 256
    %v200 = vpop.permute.xlu0 %199
    %v201 = vlaneseq
    %v202 = vshrl.u32 %v201, 7
    %v203 = vsub.s32 1, %v202
    %v204 = vrot.slane %v192, %v203
    %206 = vbcast.lane.b32.xlu0 %v204, 256
    %v207 = vpop.permute.xlu0 %206
    %v210 = vadd.f32 %v184, %v200
    %v211 = vadd.f32 %v189, %v207
    %214 = vset.pattern.permute.xlu0 0
    %215 = vperm.xlu0 %214, %v210
    %v216 = vpop.permute.xlu0 %215
    %217 = vset.pattern.permute.xlu0 0
    %218 = vperm.xlu0 %217, %v211
    %v219 = vpop.permute.xlu0 %218
    %v220 = vlaneseq
    %v221 = vand.u32 %v220, 127
    %v222 = vlaneseq
    %v223 = vshrl.u32 %v222, 7
    %v224 = vsub.s32 %v221, %v223
    %v225 = vrot.slane %v216, %v224
    %v226 = vlaneseq
    %v227 = vshrl.u32 %v226, 7
    %v228 = vsub.s32 %v221, %v227
    %v229 = vrot.slane %v219, %v228
    %vm230 = vcmask 1041409
    %v231 = vsel %vm230, %v229, %v225
    %vm233 = vcmask 58368
    %v234 = vsel %vm233, %v231, -inf
    %235 = vmax.xlane.f32.xlu0 %v234
    %v236 = vpop.xlane.xlu0 %235
    %v238 = vlaneseq
    %v239 = vshrl.u32 %v238, 7
    %v240 = vsub.s32 0, %v239
    %v241 = vrot.slane %v236, %v240
    %v242 = vlaneseq
    %v243 = vshrl.u32 %v242, 7
    %v244 = vsub.s32 1, %v243
    %v245 = vrot.slane %v236, %v244
    %v248 = vsub.f32 %v210, %v241
    %v249 = vsub.f32 %v211, %v245
    %v250 = vmul.f32 %v248, 1.442695
    %v251 = vpow.pop %v250
    %v252 = vmul.f32 %v249, 1.442695
    %v253 = vpow.pop %v252
    %256 = vset.pattern.permute.xlu0 0
    %257 = vperm.xlu0 %256, %v251
    %v258 = vpop.permute.xlu0 %257
    %259 = vset.pattern.permute.xlu0 0
    %260 = vperm.xlu0 %259, %v253
    %v261 = vpop.permute.xlu0 %260
    %v262 = vlaneseq
    %v263 = vshrl.u32 %v262, 7
    %v264 = vsub.s32 %v221, %v263
    %v265 = vrot.slane %v258, %v264
    %v266 = vlaneseq
    %v267 = vshrl.u32 %v266, 7
    %v268 = vsub.s32 %v221, %v267
    %v269 = vrot.slane %v261, %v268
    %v270 = vsel %vm230, %v269, %v265
    %v272 = vsel %vm233, %v270, 0.0
    %273 = vadd.xlane.f32.xlu0 %v272
    %v274 = vpop.xlane.xlu0 %273
    %v277 = vmul.f32 %v258, %v18
    %v278 = vmul.f32 %v261, %v19
    %v279 = vsel %vm24, %v277, 0.0
    %v280 = vrot.slane %v279, 4
    %v281 = vadd.f32 %v279, %v280
    %v282 = vrot.slane %v281, 2
    %v283 = vadd.f32 %v281, %v282
    %v284 = vrot.slane %v283, 1
    %v285 = vadd.f32 %v283, %v284
    %v286 = vsel %vm24, %v278, 0.0
    %v287 = vrot.slane %v286, 4
    %v288 = vadd.f32 %v286, %v287
    %v289 = vrot.slane %v288, 2
    %v290 = vadd.f32 %v288, %v289
    %v291 = vrot.slane %v290, 1
    %v292 = vadd.f32 %v290, %v291
    %v293 = vrcp.pop %v274
    %v295 = vrot.slane %v293, 1
    %v298 = vmul.f32 %v285, %v293
    %v299 = vmul.f32 %v292, %v295
    %v302 = vrot.slane %v299, 7
    %v303 = vsel %vm230, %v302, %v298
    %vm305 = vcmask 254976
    %306 = vst.msk [vmem:[#allocation2] sm:$0x3] %vm305, %v303
    // Predicated region
    $region18: #{tpu_custom_call.1} parent=1 // pred_check
      _
    $region19: #{tpu_custom_call.1} parent=1 // pred_check_branch
      %308 = sbr.rel (0) target = $region21
    $region20: #{tpu_custom_call.1} parent=1 // pred_region
      %s310 = ssub.s32 32, 32
      %311 = vsyncadd [#allocation3], %s310
      %s313 = sshll.u32 [#allocation2], 4
      %s314 = int_to_ptr.vmem [resolvable:$true] %s313
      %316 = dma.vmem_to_hbm [thread:$0]  %s314, 32, %s4, [#allocation3]
    $region21: #{tpu_custom_call.1} parent=1 // pred_fallthru
      _
    // Predicated region
    $region22: #{tpu_custom_call.1} parent=1 // pred_check
      _
    $region23: #{tpu_custom_call.1} parent=1 // pred_check_branch
      %318 = sbr.rel (0) target = $region25
    $region24: #{tpu_custom_call.1} parent=1 // pred_region
      %319 = dma.done [#allocation3], 32
    $region25: #{tpu_custom_call.1} parent=1 // pred_fallthru
      _
    %320 = vsyncpa [#allocation3], 1

</llo_original>
